<compile_context>
chip_gen: v7x
topology: tpu7x:2x2x1
jax: 0.10.0
libtpu: 0.0.40
codegen_flags: <defaults>
</compile_context>

<pallas_src>
import functools

import jax
import jax.numpy as jnp
from jax.experimental import pallas as pl
from jax.experimental.pallas import tpu as pltpu


def _pconv_kernel(x_ref, m_ref, w_ref, o_ref, bmat_ref, *,
                  N, KH, KW, Wp, L_pad, K, CIN_PAD):
    """Single grid step; all N images handled by a static loop.

    x_ref/m_ref: (N, CIN_PAD, FLAT)   zero-padded image / mask, H*W flat on lanes
    w_ref:       (COUT, K_PAD)        im2col weights; column K holds the bias
    o_ref:       (N, COUT, L_pad)     lane-padded flat output (row stride Wp)
    bmat_ref:    (K_PAD, L_pad)       scratch: transposed im2col matrix
    """
    K_PAD = bmat_ref.shape[0]

    # Bias row (ones) + zeroed tail rows; image independent, written once.
    rows = jax.lax.broadcasted_iota(jnp.int32, (K_PAD - K, L_pad), 0)
    bmat_ref[K:, :] = jnp.where(rows == 0, 1.0, 0.0).astype(bmat_ref.dtype)

    for n in range(N):                                    # static unroll, one grid step
        xm = x_ref[n] * m_ref[n]                          # masked input (CIN_PAD, FLAT)

        # Write the KH*KW lane-shifted taps straight into the scratch: one copy per
        # tap (no jnp.concatenate second copy). Sublane offsets are multiples of 8,
        # lane extent L_pad is a multiple of 128 -> unmasked stores.
        for kh in range(KH):
            for kw in range(KW):
                off = kh * Wp + kw
                r = (kh * KW + kw) * CIN_PAD
                bmat_ref[r:r + CIN_PAD, :] = xm[:, off:off + L_pad]

        # One MXU matmul per image; bias comes in via the ones row / bias column.
        acc = jnp.dot(w_ref[...], bmat_ref[...], preferred_element_type=jnp.float32)
        o_ref[n] = acc.astype(o_ref.dtype)


def _pconv2d_forward(x_nchw, mask_nchw, weight_oihw, bias, *, stride=1, padding=0):
    """Forward of PConv2d. Returns (output_nchw, new_mask_nchw)."""
    N, Cin, H, W = x_nchw.shape
    Cout, _, KH, KW = weight_oihw.shape
    # TODO(synk): stride > 1 path (strided conv + max_pool2d(2,2) new_mask) not implemented.
    assert stride == 1, "only stride=1 supported"
    assert Cout % Cin == 0

    HO = H + 2 * padding - KH + 1
    WO = W + 2 * padding - KW + 1
    Hp, Wp = H + 2 * padding, W + 2 * padding

    CIN_PAD = ((Cin + 7) // 8) * 8                        # sublane-aligned channels
    L = HO * Wp                                           # valid flat output length
    L_pad = ((L + 127) // 128) * 128                      # lane-aligned output length
    # Shifted tap reads go up to (KH-1)*Wp + (KW-1) + L_pad - 1; keep them in bounds.
    FLAT = ((max((KH - 1) * Wp + (KW - 1) + L_pad, Hp * Wp) + 127) // 128) * 128
    K = KH * KW * CIN_PAD                                 # contraction length (no bias)
    K_PAD = ((K + 1 + 7) // 8) * 8                        # +1 bias row, sublane aligned

    # Glue (fused under jit): NCHW is already channel-major -> pad + flatten only.
    def prep(a):
        ap = jnp.pad(a, ((0, 0), (0, CIN_PAD - Cin), (padding, padding), (padding, padding)))
        ap = ap.reshape(N, CIN_PAD, Hp * Wp)
        return jnp.pad(ap, ((0, 0), (0, 0), (0, FLAT - Hp * Wp)))

    xf = prep(x_nchw)                                     # (N, CIN_PAD, FLAT)
    mf = prep(mask_nchw)                                  # (N, CIN_PAD, FLAT)

    # Weight: OIHW -> (Cout, KH*KW*CIN_PAD) with (kh, kw, c) ordering to match bmat,
    # then append the bias column at index K and zero-pad to K_PAD.
    w_pad = jnp.pad(weight_oihw, ((0, 0), (0, CIN_PAD - Cin), (0, 0), (0, 0)))
    w2 = jnp.transpose(w_pad, (0, 2, 3, 1)).reshape(Cout, K)
    w2 = jnp.concatenate([w2, bias.reshape(Cout, 1)], axis=1)
    w2 = jnp.pad(w2, ((0, 0), (0, K_PAD - (K + 1))))      # (Cout, K_PAD)

    kernel = functools.partial(_pconv_kernel, N=N, KH=KH, KW=KW, Wp=Wp,
                               L_pad=L_pad, K=K, CIN_PAD=CIN_PAD)

    out_flat = pl.pallas_call(
        kernel,
        out_shape=jax.ShapeDtypeStruct((N, Cout, L_pad), x_nchw.dtype),
        grid_spec=pltpu.PrefetchScalarGridSpec(
            num_scalar_prefetch=0,
            grid=(1,),                                    # single step: no per-step overhead
            in_specs=[
                pl.BlockSpec((N, CIN_PAD, FLAT), lambda i: (0, 0, 0)),
                pl.BlockSpec((N, CIN_PAD, FLAT), lambda i: (0, 0, 0)),
                pl.BlockSpec((Cout, K_PAD), lambda i: (0, 0)),
            ],
            out_specs=pl.BlockSpec((N, Cout, L_pad), lambda i: (0, 0, 0)),
            scratch_shapes=[pltpu.VMEM((K_PAD, L_pad), jnp.float32)],
        ),
    )(xf, mf, w2)

    # Crop lane padding, then crop the Wp-strided ghost columns -> already NCHW.
    output = out_flat[:, :, :L].reshape(N, Cout, HO, Wp)[:, :, :, :WO]
    # new_mask: channel-tile of the input mask (stride == 1 branch of the module);
    # stays inside the jit so XLA can fuse/alias it.
    new_mask = jnp.tile(mask_nchw, (1, Cout // Cin, 1, 1))
    return output, new_mask


pconv2d_forward = jax.jit(_pconv2d_forward, static_argnames=("stride", "padding"))


if __name__ == "__main__":
    # Module config: PConv2d(in_ch=4, out_ch=8, kernel_size=3, stride=1, padding=1)
    in_ch, out_ch, ksize, stride, padding = 4, 8, 3, 1, 1
    N, H, W = 2, 16, 16

    key = jax.random.PRNGKey(0)
    kx, km, kw, kb = jax.random.split(key, 4)

    x = jax.random.normal(kx, (N, in_ch, H, W), jnp.float32)
    mask = (jax.random.uniform(km, (N, in_ch, H, W)) > 0.3).astype(jnp.float32)

    # "kaiming_normal_(a=0, fan_in)" style init: std = sqrt(2 / fan_in).
    fan_in = in_ch * ksize * ksize
    weight = jax.random.normal(kw, (out_ch, in_ch, ksize, ksize), jnp.float32) * jnp.sqrt(2.0 / fan_in)
    # Nonzero bias to exercise the folded-bias path (forward semantics are init-agnostic).
    bias = 0.1 * jax.random.normal(kb, (out_ch,), jnp.float32)

    out, new_mask = pconv2d_forward(x, mask, weight, bias, stride=stride, padding=padding)
    out = jax.block_until_ready(out)
    new_mask = jax.block_until_ready(new_mask)

    # Sanity check against XLA conv reference (same semantics as F.conv2d).
    ref = jax.lax.conv_general_dilated(
        x * mask, weight, window_strides=(stride, stride),
        padding=((padding, padding), (padding, padding)),
        dimension_numbers=("NCHW", "OIHW", "NCHW"),
    ) + bias.reshape(1, out_ch, 1, 1)
    ref_mask = jnp.tile(mask, (1, out_ch // in_ch, 1, 1))

    assert out.shape == (N, out_ch, H, W)
    assert new_mask.shape == (N, out_ch, H, W)
    assert jnp.allclose(out, ref, atol=1e-4, rtol=1e-4)
    assert jnp.array_equal(new_mask, ref_mask)
    print("KERNEL_OK")
</pallas_src>

<mosaic_0001>
module attributes {stable_mosaic.version = 11 : i64} {
  func.func @_pconv_kernel(%arg0: i32, %arg1: memref<2x8x512xf32, #tpu.memory_space<vmem>>, %arg2: memref<2x8x512xf32, #tpu.memory_space<vmem>>, %arg3: memref<8x80xf32, #tpu.memory_space<vmem>>, %arg4: memref<2x8x384xf32, #tpu.memory_space<vmem>>, %arg5: memref<80x384xf32, #tpu.memory_space<vmem>>) attributes {dimension_semantics = [#tpu.dimension_semantics<arbitrary>], iteration_bounds = array<i64: 1>, scalar_prefetch = 0 : i64, scratch_operands = 1 : i64, tpu.core_type = #tpu.core_type<tc>, window_params = [{pipeline_mode = #tpu.pipeline_mode<synchronous>, transform_indices = @transform_0, window_bounds = array<i64: 2, 8, 512>}, {pipeline_mode = #tpu.pipeline_mode<synchronous>, transform_indices = @transform_1, window_bounds = array<i64: 2, 8, 512>}, {pipeline_mode = #tpu.pipeline_mode<synchronous>, transform_indices = @transform_2, window_bounds = array<i64: 8, 80>}, {pipeline_mode = #tpu.pipeline_mode<synchronous>, transform_indices = @transform_3, window_bounds = array<i64: 2, 8, 384>}]} {
    %0 = tpu.iota {dimensions = array<i32: 0>} : vector<8x384xi32>
    %c0_i32 = arith.constant 0 : i32
    %1 = vector.broadcast %c0_i32 : i32 to vector<8x384xi32>
    %2 = arith.cmpi eq, %0, %1 : vector<8x384xi32>
    %cst = arith.constant 1.000000e+00 : f32
    %cst_0 = arith.constant 0.000000e+00 : f32
    %3 = vector.broadcast %cst : f32 to vector<8x384xf32>
    %4 = vector.broadcast %cst_0 : f32 to vector<8x384xf32>
    %5 = arith.select %2, %3, %4 : vector<8x384xi1>, vector<8x384xf32>
    %c72 = arith.constant 72 : index
    %c0 = arith.constant 0 : index
    %6 = vector.load %arg5[%c72, %c0] : memref<80x384xf32, #tpu.memory_space<vmem>>, vector<8x384xf32>
    tpu.vector_store %arg5[%c72, %c0], %5 {strides = array<i32>} : memref<80x384xf32, #tpu.memory_space<vmem>>, vector<8x384xf32>,
    %c0_1 = arith.constant 0 : index
    %c0_2 = arith.constant 0 : index
    %c0_3 = arith.constant 0 : index
    %7 = vector.load %arg1[%c0_1, %c0_2, %c0_3] : memref<2x8x512xf32, #tpu.memory_space<vmem>>, vector<1x8x512xf32>
    %8 = vector.shape_cast %7 : vector<1x8x512xf32> to vector<8x512xf32>
    %c0_4 = arith.constant 0 : index
    %c0_5 = arith.constant 0 : index
    %c0_6 = arith.constant 0 : index
    %9 = vector.load %arg2[%c0_4, %c0_5, %c0_6] : memref<2x8x512xf32, #tpu.memory_space<vmem>>, vector<1x8x512xf32>
    %10 = vector.shape_cast %9 : vector<1x8x512xf32> to vector<8x512xf32>
    %11 = arith.mulf %8, %10 : vector<8x512xf32>
    %12 = vector.extract_strided_slice %11 {offsets = [0, 0], sizes = [8, 384], strides = [1, 1]} : vector<8x512xf32> to vector<8x384xf32>
    %c0_7 = arith.constant 0 : index
    %c0_8 = arith.constant 0 : index
    %13 = vector.load %arg5[%c0_7, %c0_8] : memref<80x384xf32, #tpu.memory_space<vmem>>, vector<8x384xf32>
    tpu.vector_store %arg5[%c0_7, %c0_8], %12 {strides = array<i32>} : memref<80x384xf32, #tpu.memory_space<vmem>>, vector<8x384xf32>,
    %14 = vector.extract_strided_slice %11 {offsets = [0, 1], sizes = [8, 384], strides = [1, 1]} : vector<8x512xf32> to vector<8x384xf32>
    %c8 = arith.constant 8 : index
    %c0_9 = arith.constant 0 : index
    %15 = vector.load %arg5[%c8, %c0_9] : memref<80x384xf32, #tpu.memory_space<vmem>>, vector<8x384xf32>
    tpu.vector_store %arg5[%c8, %c0_9], %14 {strides = array<i32>} : memref<80x384xf32, #tpu.memory_space<vmem>>, vector<8x384xf32>,
    %16 = vector.extract_strided_slice %11 {offsets = [0, 2], sizes = [8, 384], strides = [1, 1]} : vector<8x512xf32> to vector<8x384xf32>
    %c16 = arith.constant 16 : index
    %c0_10 = arith.constant 0 : index
    %17 = vector.load %arg5[%c16, %c0_10] : memref<80x384xf32, #tpu.memory_space<vmem>>, vector<8x384xf32>
    tpu.vector_store %arg5[%c16, %c0_10], %16 {strides = array<i32>} : memref<80x384xf32, #tpu.memory_space<vmem>>, vector<8x384xf32>,
    %18 = vector.extract_strided_slice %11 {offsets = [0, 18], sizes = [8, 384], strides = [1, 1]} : vector<8x512xf32> to vector<8x384xf32>
    %c24 = arith.constant 24 : index
    %c0_11 = arith.constant 0 : index
    %19 = vector.load %arg5[%c24, %c0_11] : memref<80x384xf32, #tpu.memory_space<vmem>>, vector<8x384xf32>
    tpu.vector_store %arg5[%c24, %c0_11], %18 {strides = array<i32>} : memref<80x384xf32, #tpu.memory_space<vmem>>, vector<8x384xf32>,
    %20 = vector.extract_strided_slice %11 {offsets = [0, 19], sizes = [8, 384], strides = [1, 1]} : vector<8x512xf32> to vector<8x384xf32>
    %c32 = arith.constant 32 : index
    %c0_12 = arith.constant 0 : index
    %21 = vector.load %arg5[%c32, %c0_12] : memref<80x384xf32, #tpu.memory_space<vmem>>, vector<8x384xf32>
    tpu.vector_store %arg5[%c32, %c0_12], %20 {strides = array<i32>} : memref<80x384xf32, #tpu.memory_space<vmem>>, vector<8x384xf32>,
    %22 = vector.extract_strided_slice %11 {offsets = [0, 20], sizes = [8, 384], strides = [1, 1]} : vector<8x512xf32> to vector<8x384xf32>
    %c40 = arith.constant 40 : index
    %c0_13 = arith.constant 0 : index
    %23 = vector.load %arg5[%c40, %c0_13] : memref<80x384xf32, #tpu.memory_space<vmem>>, vector<8x384xf32>
    tpu.vector_store %arg5[%c40, %c0_13], %22 {strides = array<i32>} : memref<80x384xf32, #tpu.memory_space<vmem>>, vector<8x384xf32>,
    %24 = vector.extract_strided_slice %11 {offsets = [0, 36], sizes = [8, 384], strides = [1, 1]} : vector<8x512xf32> to vector<8x384xf32>
    %c48 = arith.constant 48 : index
    %c0_14 = arith.constant 0 : index
    %25 = vector.load %arg5[%c48, %c0_14] : memref<80x384xf32, #tpu.memory_space<vmem>>, vector<8x384xf32>
    tpu.vector_store %arg5[%c48, %c0_14], %24 {strides = array<i32>} : memref<80x384xf32, #tpu.memory_space<vmem>>, vector<8x384xf32>,
    %26 = vector.extract_strided_slice %11 {offsets = [0, 37], sizes = [8, 384], strides = [1, 1]} : vector<8x512xf32> to vector<8x384xf32>
    %c56 = arith.constant 56 : index
    %c0_15 = arith.constant 0 : index
    %27 = vector.load %arg5[%c56, %c0_15] : memref<80x384xf32, #tpu.memory_space<vmem>>, vector<8x384xf32>
    tpu.vector_store %arg5[%c56, %c0_15], %26 {strides = array<i32>} : memref<80x384xf32, #tpu.memory_space<vmem>>, vector<8x384xf32>,
    %28 = vector.extract_strided_slice %11 {offsets = [0, 38], sizes = [8, 384], strides = [1, 1]} : vector<8x512xf32> to vector<8x384xf32>
    %c64 = arith.constant 64 : index
    %c0_16 = arith.constant 0 : index
    %29 = vector.load %arg5[%c64, %c0_16] : memref<80x384xf32, #tpu.memory_space<vmem>>, vector<8x384xf32>
    tpu.vector_store %arg5[%c64, %c0_16], %28 {strides = array<i32>} : memref<80x384xf32, #tpu.memory_space<vmem>>, vector<8x384xf32>,
    %c0_17 = arith.constant 0 : index
    %c0_18 = arith.constant 0 : index
    %30 = vector.load %arg3[%c0_17, %c0_18] : memref<8x80xf32, #tpu.memory_space<vmem>>, vector<8x80xf32>
    %c0_19 = arith.constant 0 : index
    %c0_20 = arith.constant 0 : index
    %31 = vector.load %arg5[%c0_19, %c0_20] : memref<80x384xf32, #tpu.memory_space<vmem>>, vector<80x384xf32>
    %cst_21 = arith.constant dense<0.000000e+00> : vector<8x384xf32>
    %32 = tpu.matmul %30, %31, %cst_21 {dimension_numbers = #tpu.dot_dimension_numbers<[1], [0], [0], [1], [0, 0, 1, 1], [], []>} : vector<8x80xf32>, vector<80x384xf32>, vector<8x384xf32> -> vector<8x384xf32>
    %c0_22 = arith.constant 0 : index
    %c0_23 = arith.constant 0 : index
    %c0_24 = arith.constant 0 : index
    %33 = vector.load %arg4[%c0_22, %c0_23, %c0_24] : memref<2x8x384xf32, #tpu.memory_space<vmem>>, vector<1x8x384xf32>
    %34 = vector.shape_cast %33 : vector<1x8x384xf32> to vector<8x384xf32>
    %35 = vector.shape_cast %32 : vector<8x384xf32> to vector<1x8x384xf32>
    tpu.vector_store %arg4[%c0_22, %c0_23, %c0_24], %35 {strides = array<i32>} : memref<2x8x384xf32, #tpu.memory_space<vmem>>, vector<1x8x384xf32>,
    %c1 = arith.constant 1 : index
    %c0_25 = arith.constant 0 : index
    %c0_26 = arith.constant 0 : index
    %36 = vector.load %arg1[%c1, %c0_25, %c0_26] : memref<2x8x512xf32, #tpu.memory_space<vmem>>, vector<1x8x512xf32>
    %37 = vector.shape_cast %36 : vector<1x8x512xf32> to vector<8x512xf32>
    %c1_27 = arith.constant 1 : index
    %c0_28 = arith.constant 0 : index
    %c0_29 = arith.constant 0 : index
    %38 = vector.load %arg2[%c1_27, %c0_28, %c0_29] : memref<2x8x512xf32, #tpu.memory_space<vmem>>, vector<1x8x512xf32>
    %39 = vector.shape_cast %38 : vector<1x8x512xf32> to vector<8x512xf32>
    %40 = arith.mulf %37, %39 : vector<8x512xf32>
    %41 = vector.extract_strided_slice %40 {offsets = [0, 0], sizes = [8, 384], strides = [1, 1]} : vector<8x512xf32> to vector<8x384xf32>
    %c0_30 = arith.constant 0 : index
    %c0_31 = arith.constant 0 : index
    %42 = vector.load %arg5[%c0_30, %c0_31] : memref<80x384xf32, #tpu.memory_space<vmem>>, vector<8x384xf32>
    tpu.vector_store %arg5[%c0_30, %c0_31], %41 {strides = array<i32>} : memref<80x384xf32, #tpu.memory_space<vmem>>, vector<8x384xf32>,
    %43 = vector.extract_strided_slice %40 {offsets = [0, 1], sizes = [8, 384], strides = [1, 1]} : vector<8x512xf32> to vector<8x384xf32>
    %c8_32 = arith.constant 8 : index
    %c0_33 = arith.constant 0 : index
    %44 = vector.load %arg5[%c8_32, %c0_33] : memref<80x384xf32, #tpu.memory_space<vmem>>, vector<8x384xf32>
    tpu.vector_store %arg5[%c8_32, %c0_33], %43 {strides = array<i32>} : memref<80x384xf32, #tpu.memory_space<vmem>>, vector<8x384xf32>,
    %45 = vector.extract_strided_slice %40 {offsets = [0, 2], sizes = [8, 384], strides = [1, 1]} : vector<8x512xf32> to vector<8x384xf32>
    %c16_34 = arith.constant 16 : index
    %c0_35 = arith.constant 0 : index
    %46 = vector.load %arg5[%c16_34, %c0_35] : memref<80x384xf32, #tpu.memory_space<vmem>>, vector<8x384xf32>
    tpu.vector_store %arg5[%c16_34, %c0_35], %45 {strides = array<i32>} : memref<80x384xf32, #tpu.memory_space<vmem>>, vector<8x384xf32>,
    %47 = vector.extract_strided_slice %40 {offsets = [0, 18], sizes = [8, 384], strides = [1, 1]} : vector<8x512xf32> to vector<8x384xf32>
    %c24_36 = arith.constant 24 : index
    %c0_37 = arith.constant 0 : index
    %48 = vector.load %arg5[%c24_36, %c0_37] : memref<80x384xf32, #tpu.memory_space<vmem>>, vector<8x384xf32>
    tpu.vector_store %arg5[%c24_36, %c0_37], %47 {strides = array<i32>} : memref<80x384xf32, #tpu.memory_space<vmem>>, vector<8x384xf32>,
    %49 = vector.extract_strided_slice %40 {offsets = [0, 19], sizes = [8, 384], strides = [1, 1]} : vector<8x512xf32> to vector<8x384xf32>
    %c32_38 = arith.constant 32 : index
    %c0_39 = arith.constant 0 : index
    %50 = vector.load %arg5[%c32_38, %c0_39] : memref<80x384xf32, #tpu.memory_space<vmem>>, vector<8x384xf32>
    tpu.vector_store %arg5[%c32_38, %c0_39], %49 {strides = array<i32>} : memref<80x384xf32, #tpu.memory_space<vmem>>, vector<8x384xf32>,
    %51 = vector.extract_strided_slice %40 {offsets = [0, 20], sizes = [8, 384], strides = [1, 1]} : vector<8x512xf32> to vector<8x384xf32>
    %c40_40 = arith.constant 40 : index
    %c0_41 = arith.constant 0 : index
    %52 = vector.load %arg5[%c40_40, %c0_41] : memref<80x384xf32, #tpu.memory_space<vmem>>, vector<8x384xf32>
    tpu.vector_store %arg5[%c40_40, %c0_41], %51 {strides = array<i32>} : memref<80x384xf32, #tpu.memory_space<vmem>>, vector<8x384xf32>,
    %53 = vector.extract_strided_slice %40 {offsets = [0, 36], sizes = [8, 384], strides = [1, 1]} : vector<8x512xf32> to vector<8x384xf32>
    %c48_42 = arith.constant 48 : index
    %c0_43 = arith.constant 0 : index
    %54 = vector.load %arg5[%c48_42, %c0_43] : memref<80x384xf32, #tpu.memory_space<vmem>>, vector<8x384xf32>
    tpu.vector_store %arg5[%c48_42, %c0_43], %53 {strides = array<i32>} : memref<80x384xf32, #tpu.memory_space<vmem>>, vector<8x384xf32>,
    %55 = vector.extract_strided_slice %40 {offsets = [0, 37], sizes = [8, 384], strides = [1, 1]} : vector<8x512xf32> to vector<8x384xf32>
    %c56_44 = arith.constant 56 : index
    %c0_45 = arith.constant 0 : index
    %56 = vector.load %arg5[%c56_44, %c0_45] : memref<80x384xf32, #tpu.memory_space<vmem>>, vector<8x384xf32>
    tpu.vector_store %arg5[%c56_44, %c0_45], %55 {strides = array<i32>} : memref<80x384xf32, #tpu.memory_space<vmem>>, vector<8x384xf32>,
    %57 = vector.extract_strided_slice %40 {offsets = [0, 38], sizes = [8, 384], strides = [1, 1]} : vector<8x512xf32> to vector<8x384xf32>
    %c64_46 = arith.constant 64 : index
    %c0_47 = arith.constant 0 : index
    %58 = vector.load %arg5[%c64_46, %c0_47] : memref<80x384xf32, #tpu.memory_space<vmem>>, vector<8x384xf32>
    tpu.vector_store %arg5[%c64_46, %c0_47], %57 {strides = array<i32>} : memref<80x384xf32, #tpu.memory_space<vmem>>, vector<8x384xf32>,
    %c0_48 = arith.constant 0 : index
    %c0_49 = arith.constant 0 : index
    %59 = vector.load %arg3[%c0_48, %c0_49] : memref<8x80xf32, #tpu.memory_space<vmem>>, vector<8x80xf32>
    %c0_50 = arith.constant 0 : index
    %c0_51 = arith.constant 0 : index
    %60 = vector.load %arg5[%c0_50, %c0_51] : memref<80x384xf32, #tpu.memory_space<vmem>>, vector<80x384xf32>
    %cst_52 = arith.constant dense<0.000000e+00> : vector<8x384xf32>
    %61 = tpu.matmul %59, %60, %cst_52 {dimension_numbers = #tpu.dot_dimension_numbers<[1], [0], [0], [1], [0, 0, 1, 1], [], []>} : vector<8x80xf32>, vector<80x384xf32>, vector<8x384xf32> -> vector<8x384xf32>
    %c1_53 = arith.constant 1 : index
    %c0_54 = arith.constant 0 : index
    %c0_55 = arith.constant 0 : index
    %62 = vector.load %arg4[%c1_53, %c0_54, %c0_55] : memref<2x8x384xf32, #tpu.memory_space<vmem>>, vector<1x8x384xf32>
    %63 = vector.shape_cast %62 : vector<1x8x384xf32> to vector<8x384xf32>
    %64 = vector.shape_cast %61 : vector<8x384xf32> to vector<1x8x384xf32>
    tpu.vector_store %arg4[%c1_53, %c0_54, %c0_55], %64 {strides = array<i32>} : memref<2x8x384xf32, #tpu.memory_space<vmem>>, vector<1x8x384xf32>,
    return
  }
  func.func @transform_0(%arg0: i32) -> (i32, i32, i32) {
    %c0_i32 = arith.constant 0 : i32
    %c0_i32_0 = arith.constant 0 : i32
    %c0_i32_1 = arith.constant 0 : i32
    %c0_i32_2 = arith.constant 0 : i32
    return %c0_i32, %c0_i32_0, %c0_i32_1 : i32, i32, i32
  }
  func.func @transform_1(%arg0: i32) -> (i32, i32, i32) {
    %c0_i32 = arith.constant 0 : i32
    %c0_i32_0 = arith.constant 0 : i32
    %c0_i32_1 = arith.constant 0 : i32
    %c0_i32_2 = arith.constant 0 : i32
    return %c0_i32, %c0_i32_0, %c0_i32_1 : i32, i32, i32
  }
  func.func @transform_2(%arg0: i32) -> (i32, i32) {
    %c0_i32 = arith.constant 0 : i32
    %c0_i32_0 = arith.constant 0 : i32
    %c0_i32_1 = arith.constant 0 : i32
    return %c0_i32, %c0_i32_0 : i32, i32
  }
  func.func @transform_3(%arg0: i32) -> (i32, i32, i32) {
    %c0_i32 = arith.constant 0 : i32
    %c0_i32_0 = arith.constant 0 : i32
    %c0_i32_1 = arith.constant 0 : i32
    %c0_i32_2 = arith.constant 0 : i32
    return %c0_i32, %c0_i32_0, %c0_i32_1 : i32, i32, i32
  }
}

</mosaic_0001>

<llo_original>
// kernel: _pconv2d_forward.1
$region0: #{_pconv2d_forward.1}
  #allocation0 [shape = 'u32[]', space=smem, size = 0x4, offset = 0x4, fixed_abs, tag = 'smem constant byte address 0x4 - core index']
  #allocation1 [shape = 'u32[144,128]{1,0:T(1,128)}', space=vmem, size = 0x12000, scoped, tag = 'internal scratch']
  #allocation2 [shape = 'f32[80,384]{1,0:T(8,128)}', space=vmem, size = 0x1e000, scoped, tag = 'scratch operand']
  %s0 = inlined_call_operand.vmem [shape: f32[2,8,512], index: 0, kind: input, shape index: {}]
  %s1 = inlined_call_operand.vmem [shape: f32[2,8,512], index: 1, kind: input, shape index: {}]
  %s2 = inlined_call_operand.vmem [shape: f32[8,80], index: 2, kind: input, shape index: {}]
  %s3 = inlined_call_operand.vmem [shape: f32[2,8,384], index: 3, kind: output, shape index: {}]
  %s4 = sld [smem:[#allocation0]]
  $region22: #{_pconv2d_forward.1} parent=0
    _
  %s6 = ssub.s32 1, %s4
  %s7 = scalar_select 0, %s6, %s4
  // Predicated region
  $region2: #{_pconv2d_forward.1} parent=0 // pred_check
    _
  $region3: #{_pconv2d_forward.1} parent=0 // pred_check_branch
    %9 = sbr.rel (0) target = $region5
  $region4: #{_pconv2d_forward.1} parent=0 // pred_region
    _
  $region5: #{_pconv2d_forward.1} parent=0 // pred_fallthru
    _
  // Predicated region
  $region6: #{_pconv2d_forward.1} parent=0 // pred_check
    _
  $region7: #{_pconv2d_forward.1} parent=0 // pred_check_branch
    %11 = sbr.rel (0) target = $region9
  $region8: #{_pconv2d_forward.1} parent=0 // pred_region
    _
  $region9: #{_pconv2d_forward.1} parent=0 // pred_fallthru
    _
  // Predicated region
  $region10: #{_pconv2d_forward.1} parent=0 // pred_check
    _
  $region11: #{_pconv2d_forward.1} parent=0 // pred_check_branch
    %13 = sbr.rel (0) target = $region13
  $region12: #{_pconv2d_forward.1} parent=0 // pred_region
    _
  $region13: #{_pconv2d_forward.1} parent=0 // pred_fallthru
    _
  %v14 = vlaneseq
  %v15 = vshrl.u32 %v14, 7
  %vm16 = vcmp.eq.s32.totalorder %v15, 0
  %v17 = vsel %vm16, 1.0, 0.0
  %18 = vst [vmem:[#allocation2 + $0xd8] sm:$0xff] %v17
  %19 = vst [vmem:[#allocation2 + $0xe0] sm:$0xff] %v17
  %20 = vst [vmem:[#allocation2 + $0xe8] sm:$0xff] %v17
  %v21 = vld [vmem:[%s0] sm:$0xff]
  %v22 = vld [vmem:[%s0 + $0x8] sm:$0xff]
  %v23 = vld [vmem:[%s0 + $0x10] sm:$0xff]
  %v24 = vld [vmem:[%s0 + $0x18] sm:$0xff]
  %v25 = vld [vmem:[%s1] sm:$0xff]
  %v26 = vld [vmem:[%s1 + $0x8] sm:$0xff]
  %v27 = vld [vmem:[%s1 + $0x10] sm:$0xff]
  %v28 = vld [vmem:[%s1 + $0x18] sm:$0xff]
  %v29 = vmul.f32 %v21, %v25
  %v30 = vmul.f32 %v22, %v26
  %v31 = vmul.f32 %v23, %v27
  %v32 = vmul.f32 %v24, %v28
  %33 = vst [vmem:[#allocation2] sm:$0xff] %v29
  %34 = vst [vmem:[#allocation2 + $0x8] sm:$0xff] %v30
  %35 = vst [vmem:[#allocation2 + $0x10] sm:$0xff] %v31
  %40 = vrot.lane.b32.xlu0 %v29, 127
  %v41 = vpop.permute.xlu0 %40
  %42 = vrot.lane.b32.xlu0 %v30, 127
  %v43 = vpop.permute.xlu0 %42
  %44 = vrot.lane.b32.xlu0 %v31, 127
  %v45 = vpop.permute.xlu0 %44
  %46 = vrot.lane.b32.xlu0 %v32, 127
  %v47 = vpop.permute.xlu0 %46
  %vm48 = vcmask 1039360
  %v49 = vsel %vm48, %v41, %v43
  %v50 = vsel %vm48, %v43, %v45
  %v51 = vsel %vm48, %v45, %v47
  %55 = vst [vmem:[#allocation2 + $0x18] sm:$0xff] %v49
  %56 = vst [vmem:[#allocation2 + $0x20] sm:$0xff] %v50
  %57 = vst [vmem:[#allocation2 + $0x28] sm:$0xff] %v51
  %58 = vrot.lane.b32.xlu0 %v29, 126
  %v59 = vpop.permute.xlu0 %58
  %60 = vrot.lane.b32.xlu0 %v30, 126
  %v61 = vpop.permute.xlu0 %60
  %62 = vrot.lane.b32.xlu0 %v31, 126
  %v63 = vpop.permute.xlu0 %62
  %64 = vrot.lane.b32.xlu0 %v32, 126
  %v65 = vpop.permute.xlu0 %64
  %vm66 = vcmask 1031168
  %v67 = vsel %vm66, %v59, %v61
  %v68 = vsel %vm66, %v61, %v63
  %v69 = vsel %vm66, %v63, %v65
  %73 = vst [vmem:[#allocation2 + $0x30] sm:$0xff] %v67
  %74 = vst [vmem:[#allocation2 + $0x38] sm:$0xff] %v68
  %75 = vst [vmem:[#allocation2 + $0x40] sm:$0xff] %v69
  %76 = vrot.lane.b32.xlu0 %v29, 110
  %v77 = vpop.permute.xlu0 %76
  %78 = vrot.lane.b32.xlu0 %v30, 110
  %v79 = vpop.permute.xlu0 %78
  %80 = vrot.lane.b32.xlu0 %v31, 110
  %v81 = vpop.permute.xlu0 %80
  %82 = vrot.lane.b32.xlu0 %v32, 110
  %v83 = vpop.permute.xlu0 %82
  %vm84 = vcmask 900096
  %v85 = vsel %vm84, %v77, %v79
  %v86 = vsel %vm84, %v79, %v81
  %v87 = vsel %vm84, %v81, %v83
  %91 = vst [vmem:[#allocation2 + $0x48] sm:$0xff] %v85
  %92 = vst [vmem:[#allocation2 + $0x50] sm:$0xff] %v86
  %93 = vst [vmem:[#allocation2 + $0x58] sm:$0xff] %v87
  %94 = vrot.lane.b32.xlu0 %v29, 109
  %v95 = vpop.permute.xlu0 %94
  %96 = vrot.lane.b32.xlu0 %v30, 109
  %v97 = vpop.permute.xlu0 %96
  %98 = vrot.lane.b32.xlu0 %v31, 109
  %v99 = vpop.permute.xlu0 %98
  %100 = vrot.lane.b32.xlu0 %v32, 109
  %v101 = vpop.permute.xlu0 %100
  %vm102 = vcmask 891904
  %v103 = vsel %vm102, %v95, %v97
  %v104 = vsel %vm102, %v97, %v99
  %v105 = vsel %vm102, %v99, %v101
  %109 = vst [vmem:[#allocation2 + $0x60] sm:$0xff] %v103
  %110 = vst [vmem:[#allocation2 + $0x68] sm:$0xff] %v104
  %111 = vst [vmem:[#allocation2 + $0x70] sm:$0xff] %v105
  %112 = vrot.lane.b32.xlu0 %v29, 108
  %v113 = vpop.permute.xlu0 %112
  %114 = vrot.lane.b32.xlu0 %v30, 108
  %v115 = vpop.permute.xlu0 %114
  %116 = vrot.lane.b32.xlu0 %v31, 108
  %v117 = vpop.permute.xlu0 %116
  %118 = vrot.lane.b32.xlu0 %v32, 108
  %v119 = vpop.permute.xlu0 %118
  %vm120 = vcmask 883712
  %v121 = vsel %vm120, %v113, %v115
  %v122 = vsel %vm120, %v115, %v117
  %v123 = vsel %vm120, %v117, %v119
  %127 = vst [vmem:[#allocation2 + $0x78] sm:$0xff] %v121
  %128 = vst [vmem:[#allocation2 + $0x80] sm:$0xff] %v122
  %129 = vst [vmem:[#allocation2 + $0x88] sm:$0xff] %v123
  %130 = vrot.lane.b32.xlu0 %v29, 92
  %v131 = vpop.permute.xlu0 %130
  %132 = vrot.lane.b32.xlu0 %v30, 92
  %v133 = vpop.permute.xlu0 %132
  %134 = vrot.lane.b32.xlu0 %v31, 92
  %v135 = vpop.permute.xlu0 %134
  %136 = vrot.lane.b32.xlu0 %v32, 92
  %v137 = vpop.permute.xlu0 %136
  %vm138 = vcmask 752640
  %v139 = vsel %vm138, %v131, %v133
  %v140 = vsel %vm138, %v133, %v135
  %v141 = vsel %vm138, %v135, %v137
  %145 = vst [vmem:[#allocation2 + $0x90] sm:$0xff] %v139
  %146 = vst [vmem:[#allocation2 + $0x98] sm:$0xff] %v140
  %147 = vst [vmem:[#allocation2 + $0xa0] sm:$0xff] %v141
  %148 = vrot.lane.b32.xlu0 %v29, 91
  %v149 = vpop.permute.xlu0 %148
  %150 = vrot.lane.b32.xlu0 %v30, 91
  %v151 = vpop.permute.xlu0 %150
  %152 = vrot.lane.b32.xlu0 %v31, 91
  %v153 = vpop.permute.xlu0 %152
  %154 = vrot.lane.b32.xlu0 %v32, 91
  %v155 = vpop.permute.xlu0 %154
  %vm156 = vcmask 744448
  %v157 = vsel %vm156, %v149, %v151
  %v158 = vsel %vm156, %v151, %v153
  %v159 = vsel %vm156, %v153, %v155
  %163 = vst [vmem:[#allocation2 + $0xa8] sm:$0xff] %v157
  %164 = vst [vmem:[#allocation2 + $0xb0] sm:$0xff] %v158
  %165 = vst [vmem:[#allocation2 + $0xb8] sm:$0xff] %v159
  %166 = vrot.lane.b32.xlu0 %v29, 90
  %v167 = vpop.permute.xlu0 %166
  %168 = vrot.lane.b32.xlu0 %v30, 90
  %v169 = vpop.permute.xlu0 %168
  %170 = vrot.lane.b32.xlu0 %v31, 90
  %v171 = vpop.permute.xlu0 %170
  %172 = vrot.lane.b32.xlu0 %v32, 90
  %v173 = vpop.permute.xlu0 %172
  %vm174 = vcmask 736256
  %v175 = vsel %vm174, %v167, %v169
  %v176 = vsel %vm174, %v169, %v171
  %v177 = vsel %vm174, %v171, %v173
  %181 = vst [vmem:[#allocation2 + $0xc0] sm:$0xff] %v175
  %182 = vst [vmem:[#allocation2 + $0xc8] sm:$0xff] %v176
  %183 = vst [vmem:[#allocation2 + $0xd0] sm:$0xff] %v177
  %v184 = vld [vmem:[%s2] sm:$0xff]
  %v185 = vld [vmem:[#allocation2] sm:$0xff]
  %v186 = vld [vmem:[#allocation2 + $0x8] sm:$0xff]
  %v187 = vld [vmem:[#allocation2 + $0x10] sm:$0xff]
  %v188 = vld [vmem:[#allocation2 + $0x18] sm:$0xff]
  %v189 = vld [vmem:[#allocation2 + $0x20] sm:$0xff]
  %v190 = vld [vmem:[#allocation2 + $0x28] sm:$0xff]
  %v191 = vld [vmem:[#allocation2 + $0x30] sm:$0xff]
  %v192 = vld [vmem:[#allocation2 + $0x38] sm:$0xff]
  %v193 = vld [vmem:[#allocation2 + $0x40] sm:$0xff]
  %v194 = vld [vmem:[#allocation2 + $0x48] sm:$0xff]
  %v195 = vld [vmem:[#allocation2 + $0x50] sm:$0xff]
  %v196 = vld [vmem:[#allocation2 + $0x58] sm:$0xff]
  %v197 = vld [vmem:[#allocation2 + $0x60] sm:$0xff]
  %v198 = vld [vmem:[#allocation2 + $0x68] sm:$0xff]
  %v199 = vld [vmem:[#allocation2 + $0x70] sm:$0xff]
  %v200 = vld [vmem:[#allocation2 + $0x78] sm:$0xff]
  %v201 = vld [vmem:[#allocation2 + $0x80] sm:$0xff]
  %v202 = vld [vmem:[#allocation2 + $0x88] sm:$0xff]
  %v203 = vld [vmem:[#allocation2 + $0x90] sm:$0xff]
  %v204 = vld [vmem:[#allocation2 + $0x98] sm:$0xff]
  %v205 = vld [vmem:[#allocation2 + $0xa0] sm:$0xff]
  %v206 = vld [vmem:[#allocation2 + $0xa8] sm:$0xff]
  %v207 = vld [vmem:[#allocation2 + $0xb0] sm:$0xff]
  %v208 = vld [vmem:[#allocation2 + $0xb8] sm:$0xff]
  %v209 = vld [vmem:[#allocation2 + $0xc0] sm:$0xff]
  %v210 = vld [vmem:[#allocation2 + $0xc8] sm:$0xff]
  %v211 = vld [vmem:[#allocation2 + $0xd0] sm:$0xff]
  %v212 = vld [vmem:[#allocation2 + $0xd8] sm:$0xff]
  %v213 = vld [vmem:[#allocation2 + $0xe0] sm:$0xff]
  %v214 = vld [vmem:[#allocation2 + $0xe8] sm:$0xff]
  %vm215 = vcmask 654336
  %v217 = vsel %vm215, %v184, 0
  %219 = vmatprep.subr.mxu0 %v186
  %220 = vmatpush1.msra.mxu0 %v185
  %221 = vmatprep.subr.mxu0 %v189
  %222 = vmatpush1.msra.mxu0 %v188
  %223 = vmatprep.subr.mxu0 %v192
  %224 = vmatpush1.msra.mxu0 %v191
  %225 = vmatprep.subr.mxu0 %v195
  %226 = vmatpush1.msra.mxu0 %v194
  %227 = vmatprep.subr.mxu0 %v198
  %228 = vmatpush1.msra.mxu0 %v197
  %229 = vmatprep.subr.mxu0 %v201
  %230 = vmatpush1.msra.mxu0 %v200
  %231 = vmatprep.subr.mxu0 %v204
  %232 = vmatpush1.msra.mxu0 %v203
  %233 = vmatprep.subr.mxu0 %v207
  %234 = vmatpush1.msra.mxu0 %v206
  %235 = vmatprep.subr.mxu0 %v210
  %236 = vmatpush1.msra.mxu0 %v209
  %237 = vmatprep.subr.mxu0 %v213
  %238 = vmatpush1.msra.mxu0 %v212
  %239 = vmatprep.subr.mxu0 0.0
  %240 = vmatpush1.msra.mxu0 0.0
  %241 = vmatprep.subr.mxu0 0.0
  %242 = vmatpush1.msra.mxu0 0.0
  %243 = vmatprep.subr.mxu0 0.0
  %244 = vmatpush1.msra.mxu0 0.0
  %245 = vmatprep.subr.mxu0 0.0
  %246 = vmatpush1.msra.mxu0 0.0
  %247 = vmatprep.subr.mxu0 0.0
  %248 = vmatpush1.msra.mxu0 0.0
  %249 = vmatprep.subr.mxu0 0.0
  %250 = vmatpush1.msra.mxu0 0.0
  %251 = vmatprep.subr.mxu0 0.0
  %252 = vmatpush1.msra.mxu0 0.0
  %253 = vmatprep.subr.mxu0 0.0
  %254 = vmatpush1.msra.mxu0 0.0
  %255 = vmatprep.subr.mxu0 0.0
  %256 = vmatpush1.msra.mxu0 0.0
  %257 = vmatprep.subr.mxu0 0.0
  %258 = vmatpush1.msra.mxu0 0.0
  %259 = vmatprep.subr.mxu0 0.0
  %260 = vmatpush1.msra.mxu0 0.0
  %261 = vmatprep.subr.mxu0 0.0
  %262 = vmatpush1.msra.mxu0 0.0
  %263 = vmatprep.subr.mxu0 0.0
  %264 = vmatpush1.msra.mxu0 0.0
  %265 = vmatprep.subr.mxu0 0.0
  %266 = vmatpush1.msra.mxu0 0.0
  %267 = vmatprep.subr.mxu0 0.0
  %268 = vmatpush1.msra.mxu0 0.0
  %269 = vmatprep.subr.mxu0 0.0
  %270 = vmatpush1.msra.mxu0 0.0
  %271 = vmatprep.subr.mxu0 0.0
  %272 = vmatpush1.msra.mxu0 0.0
  %273 = vmatprep.subr.mxu0 0.0
  %274 = vmatpush1.msra.mxu0 0.0
  %275 = vmatprep.subr.mxu0 0.0
  %276 = vmatpush1.msra.mxu0 0.0
  %277 = vmatprep.subr.mxu0 0.0
  %278 = vmatpush1.msra.mxu0 0.0
  %279 = vmatprep.subr.mxu0 0.0
  %280 = vmatpush1.msra.mxu0 0.0
  %281 = vmatprep.subr.mxu0 0.0
  %282 = vmatpush1.msra.mxu0 0.0
  %283 = vmatprep.mubr.f32.mxu0 0.0
  %284 = vmatmul.mubr.f32.gmra.mrb[0].mxu0 %v217
  %v285 = vpop.f32.mrb[0].mxu0
  %v286 = vadd.f32 0.0, %v285
  %v287 = vpop.f32.mrb[0].mxu0
  %v288 = vadd.f32 0.0, %v287
  %289 = vdwg.mxu0
  %290 = vmatprep.subr.mxu0 0.0
  %291 = vmatpush1.msra.mxu0 %v187
  %292 = vmatprep.subr.mxu0 0.0
  %293 = vmatpush1.msra.mxu0 %v190
  %294 = vmatprep.subr.mxu0 0.0
  %295 = vmatpush1.msra.mxu0 %v193
  %296 = vmatprep.subr.mxu0 0.0
  %297 = vmatpush1.msra.mxu0 %v196
  %298 = vmatprep.subr.mxu0 0.0
  %299 = vmatpush1.msra.mxu0 %v199
  %300 = vmatprep.subr.mxu0 0.0
  %301 = vmatpush1.msra.mxu0 %v202
  %302 = vmatprep.subr.mxu0 0.0
  %303 = vmatpush1.msra.mxu0 %v205
  %304 = vmatprep.subr.mxu0 0.0
  %305 = vmatpush1.msra.mxu0 %v208
  %306 = vmatprep.subr.mxu0 0.0
  %307 = vmatpush1.msra.mxu0 %v211
  %308 = vmatprep.subr.mxu0 0.0
  %309 = vmatpush1.msra.mxu0 %v214
  %310 = vmatprep.subr.mxu0 0.0
  %311 = vmatpush1.msra.mxu0 0.0
  %312 = vmatprep.subr.mxu0 0.0
  %313 = vmatpush1.msra.mxu0 0.0
  %314 = vmatprep.subr.mxu0 0.0
  %315 = vmatpush1.msra.mxu0 0.0
  %316 = vmatprep.subr.mxu0 0.0
  %317 = vmatpush1.msra.mxu0 0.0
  %318 = vmatprep.subr.mxu0 0.0
  %319 = vmatpush1.msra.mxu0 0.0
  %320 = vmatprep.subr.mxu0 0.0
  %321 = vmatpush1.msra.mxu0 0.0
  %322 = vmatprep.subr.mxu0 0.0
  %323 = vmatpush1.msra.mxu0 0.0
  %324 = vmatprep.subr.mxu0 0.0
  %325 = vmatpush1.msra.mxu0 0.0
  %326 = vmatprep.subr.mxu0 0.0
  %327 = vmatpush1.msra.mxu0 0.0
  %328 = vmatprep.subr.mxu0 0.0
  %329 = vmatpush1.msra.mxu0 0.0
  %330 = vmatprep.subr.mxu0 0.0
  %331 = vmatpush1.msra.mxu0 0.0
  %332 = vmatprep.subr.mxu0 0.0
  %333 = vmatpush1.msra.mxu0 0.0
  %334 = vmatprep.subr.mxu0 0.0
  %335 = vmatpush1.msra.mxu0 0.0
  %336 = vmatprep.subr.mxu0 0.0
  %337 = vmatpush1.msra.mxu0 0.0
  %338 = vmatprep.subr.mxu0 0.0
  %339 = vmatpush1.msra.mxu0 0.0
  %340 = vmatprep.subr.mxu0 0.0
  %341 = vmatpush1.msra.mxu0 0.0
  %342 = vmatprep.subr.mxu0 0.0
  %343 = vmatpush1.msra.mxu0 0.0
  %344 = vmatprep.subr.mxu0 0.0
  %345 = vmatpush1.msra.mxu0 0.0
  %346 = vmatprep.subr.mxu0 0.0
  %347 = vmatpush1.msra.mxu0 0.0
  %348 = vmatprep.subr.mxu0 0.0
  %349 = vmatpush1.msra.mxu0 0.0
  %350 = vmatprep.subr.mxu0 0.0
  %351 = vmatpush1.msra.mxu0 0.0
  %352 = vmatprep.subr.mxu0 0.0
  %353 = vmatpush1.msra.mxu0 0.0
  %354 = vmatprep.mubr.f32.mxu0 0.0
  %355 = vmatmul.mubr.f32.gmra.mrb[0].mxu0 %v217
  %v356 = vpop.f32.mrb[0].mxu0
  %v357 = vadd.f32 0.0, %v356
  %v358 = vpop.f32.mrb[0].mxu0
  %359 = vdwg.mxu0
  %360 = vst [vmem:[%s3] sm:$0xff] %v286
  %361 = vst [vmem:[%s3 + $0x8] sm:$0xff] %v288
  %362 = vst [vmem:[%s3 + $0x10] sm:$0xff] %v357
  %s363 = scalar_lea.vmem %s0, 32
  %v364 = vld [vmem:[%s363] sm:$0xff]
  %v365 = vld [vmem:[%s363 + $0x8] sm:$0xff]
  %v366 = vld [vmem:[%s363 + $0x10] sm:$0xff]
  %v367 = vld [vmem:[%s363 + $0x18] sm:$0xff]
  %s368 = scalar_lea.vmem %s1, 32
  %v369 = vld [vmem:[%s368] sm:$0xff]
  %v370 = vld [vmem:[%s368 + $0x8] sm:$0xff]
  %v371 = vld [vmem:[%s368 + $0x10] sm:$0xff]
  %v372 = vld [vmem:[%s368 + $0x18] sm:$0xff]
  %v373 = vmul.f32 %v364, %v369
  %v374 = vmul.f32 %v365, %v370
  %v375 = vmul.f32 %v366, %v371
  %v376 = vmul.f32 %v367, %v372
  %377 = vst [vmem:[#allocation2] sm:$0xff] %v373
  %378 = vst [vmem:[#allocation2 + $0x8] sm:$0xff] %v374
  %379 = vst [vmem:[#allocation2 + $0x10] sm:$0xff] %v375
  %384 = vrot.lane.b32.xlu0 %v373, 127
  %v385 = vpop.permute.xlu0 %384
  %386 = vrot.lane.b32.xlu0 %v374, 127
  %v387 = vpop.permute.xlu0 %386
  %388 = vrot.lane.b32.xlu0 %v375, 127
  %v389 = vpop.permute.xlu0 %388
  %390 = vrot.lane.b32.xlu0 %v376, 127
  %v391 = vpop.permute.xlu0 %390
  %v392 = vsel %vm48, %v385, %v387
  %v393 = vsel %vm48, %v387, %v389
  %v394 = vsel %vm48, %v389, %v391
  %398 = vst [vmem:[#allocation2 + $0x18] sm:$0xff] %v392
  %399 = vst [vmem:[#allocation2 + $0x20] sm:$0xff] %v393
  %400 = vst [vmem:[#allocation2 + $0x28] sm:$0xff] %v394
  %401 = vrot.lane.b32.xlu0 %v373, 126
  %v402 = vpop.permute.xlu0 %401
  %403 = vrot.lane.b32.xlu0 %v374, 126
  %v404 = vpop.permute.xlu0 %403
  %405 = vrot.lane.b32.xlu0 %v375, 126
  %v406 = vpop.permute.xlu0 %405
  %407 = vrot.lane.b32.xlu0 %v376, 126
  %v408 = vpop.permute.xlu0 %407
  %v409 = vsel %vm66, %v402, %v404
  %v410 = vsel %vm66, %v404, %v406
  %v411 = vsel %vm66, %v406, %v408
  %415 = vst [vmem:[#allocation2 + $0x30] sm:$0xff] %v409
  %416 = vst [vmem:[#allocation2 + $0x38] sm:$0xff] %v410
  %417 = vst [vmem:[#allocation2 + $0x40] sm:$0xff] %v411
  %418 = vrot.lane.b32.xlu0 %v373, 110
  %v419 = vpop.permute.xlu0 %418
  %420 = vrot.lane.b32.xlu0 %v374, 110
  %v421 = vpop.permute.xlu0 %420
  %422 = vrot.lane.b32.xlu0 %v375, 110
  %v423 = vpop.permute.xlu0 %422
  %424 = vrot.lane.b32.xlu0 %v376, 110
  %v425 = vpop.permute.xlu0 %424
  %v426 = vsel %vm84, %v419, %v421
  %v427 = vsel %vm84, %v421, %v423
  %v428 = vsel %vm84, %v423, %v425
  %432 = vst [vmem:[#allocation2 + $0x48] sm:$0xff] %v426
  %433 = vst [vmem:[#allocation2 + $0x50] sm:$0xff] %v427
  %434 = vst [vmem:[#allocation2 + $0x58] sm:$0xff] %v428
  %435 = vrot.lane.b32.xlu0 %v373, 109
  %v436 = vpop.permute.xlu0 %435
  %437 = vrot.lane.b32.xlu0 %v374, 109
  %v438 = vpop.permute.xlu0 %437
  %439 = vrot.lane.b32.xlu0 %v375, 109
  %v440 = vpop.permute.xlu0 %439
  %441 = vrot.lane.b32.xlu0 %v376, 109
  %v442 = vpop.permute.xlu0 %441
  %v443 = vsel %vm102, %v436, %v438
  %v444 = vsel %vm102, %v438, %v440
  %v445 = vsel %vm102, %v440, %v442
  %449 = vst [vmem:[#allocation2 + $0x60] sm:$0xff] %v443
  %450 = vst [vmem:[#allocation2 + $0x68] sm:$0xff] %v444
  %451 = vst [vmem:[#allocation2 + $0x70] sm:$0xff] %v445
  %452 = vrot.lane.b32.xlu0 %v373, 108
  %v453 = vpop.permute.xlu0 %452
  %454 = vrot.lane.b32.xlu0 %v374, 108
  %v455 = vpop.permute.xlu0 %454
  %456 = vrot.lane.b32.xlu0 %v375, 108
  %v457 = vpop.permute.xlu0 %456
  %458 = vrot.lane.b32.xlu0 %v376, 108
  %v459 = vpop.permute.xlu0 %458
  %v460 = vsel %vm120, %v453, %v455
  %v461 = vsel %vm120, %v455, %v457
  %v462 = vsel %vm120, %v457, %v459
  %466 = vst [vmem:[#allocation2 + $0x78] sm:$0xff] %v460
  %467 = vst [vmem:[#allocation2 + $0x80] sm:$0xff] %v461
  %468 = vst [vmem:[#allocation2 + $0x88] sm:$0xff] %v462
  %469 = vrot.lane.b32.xlu0 %v373, 92
  %v470 = vpop.permute.xlu0 %469
  %471 = vrot.lane.b32.xlu0 %v374, 92
  %v472 = vpop.permute.xlu0 %471
  %473 = vrot.lane.b32.xlu0 %v375, 92
  %v474 = vpop.permute.xlu0 %473
  %475 = vrot.lane.b32.xlu0 %v376, 92
  %v476 = vpop.permute.xlu0 %475
  %v477 = vsel %vm138, %v470, %v472
  %v478 = vsel %vm138, %v472, %v474
  %v479 = vsel %vm138, %v474, %v476
  %483 = vst [vmem:[#allocation2 + $0x90] sm:$0xff] %v477
  %484 = vst [vmem:[#allocation2 + $0x98] sm:$0xff] %v478
  %485 = vst [vmem:[#allocation2 + $0xa0] sm:$0xff] %v479
  %486 = vrot.lane.b32.xlu0 %v373, 91
  %v487 = vpop.permute.xlu0 %486
  %488 = vrot.lane.b32.xlu0 %v374, 91
  %v489 = vpop.permute.xlu0 %488
  %490 = vrot.lane.b32.xlu0 %v375, 91
  %v491 = vpop.permute.xlu0 %490
  %492 = vrot.lane.b32.xlu0 %v376, 91
  %v493 = vpop.permute.xlu0 %492
  %v494 = vsel %vm156, %v487, %v489
  %v495 = vsel %vm156, %v489, %v491
  %v496 = vsel %vm156, %v491, %v493
  %500 = vst [vmem:[#allocation2 + $0xa8] sm:$0xff] %v494
  %501 = vst [vmem:[#allocation2 + $0xb0] sm:$0xff] %v495
  %502 = vst [vmem:[#allocation2 + $0xb8] sm:$0xff] %v496
  %503 = vrot.lane.b32.xlu0 %v373, 90
  %v504 = vpop.permute.xlu0 %503
  %505 = vrot.lane.b32.xlu0 %v374, 90
  %v506 = vpop.permute.xlu0 %505
  %507 = vrot.lane.b32.xlu0 %v375, 90
  %v508 = vpop.permute.xlu0 %507
  %509 = vrot.lane.b32.xlu0 %v376, 90
  %v510 = vpop.permute.xlu0 %509
  %v511 = vsel %vm174, %v504, %v506
  %v512 = vsel %vm174, %v506, %v508
  %v513 = vsel %vm174, %v508, %v510
  %517 = vst [vmem:[#allocation2 + $0xc0] sm:$0xff] %v511
  %518 = vst [vmem:[#allocation2 + $0xc8] sm:$0xff] %v512
  %519 = vst [vmem:[#allocation2 + $0xd0] sm:$0xff] %v513
  %v520 = vld [vmem:[%s2] sm:$0xff]
  %v521 = vld [vmem:[#allocation2] sm:$0xff]
  %v522 = vld [vmem:[#allocation2 + $0x8] sm:$0xff]
  %v523 = vld [vmem:[#allocation2 + $0x10] sm:$0xff]
  %v524 = vld [vmem:[#allocation2 + $0x18] sm:$0xff]
  %v525 = vld [vmem:[#allocation2 + $0x20] sm:$0xff]
  %v526 = vld [vmem:[#allocation2 + $0x28] sm:$0xff]
  %v527 = vld [vmem:[#allocation2 + $0x30] sm:$0xff]
  %v528 = vld [vmem:[#allocation2 + $0x38] sm:$0xff]
  %v529 = vld [vmem:[#allocation2 + $0x40] sm:$0xff]
  %v530 = vld [vmem:[#allocation2 + $0x48] sm:$0xff]
  %v531 = vld [vmem:[#allocation2 + $0x50] sm:$0xff]
  %v532 = vld [vmem:[#allocation2 + $0x58] sm:$0xff]
  %v533 = vld [vmem:[#allocation2 + $0x60] sm:$0xff]
  %v534 = vld [vmem:[#allocation2 + $0x68] sm:$0xff]
  %v535 = vld [vmem:[#allocation2 + $0x70] sm:$0xff]
  %v536 = vld [vmem:[#allocation2 + $0x78] sm:$0xff]
  %v537 = vld [vmem:[#allocation2 + $0x80] sm:$0xff]
  %v538 = vld [vmem:[#allocation2 + $0x88] sm:$0xff]
  %v539 = vld [vmem:[#allocation2 + $0x90] sm:$0xff]
  %v540 = vld [vmem:[#allocation2 + $0x98] sm:$0xff]
  %v541 = vld [vmem:[#allocation2 + $0xa0] sm:$0xff]
  %v542 = vld [vmem:[#allocation2 + $0xa8] sm:$0xff]
  %v543 = vld [vmem:[#allocation2 + $0xb0] sm:$0xff]
  %v544 = vld [vmem:[#allocation2 + $0xb8] sm:$0xff]
  %v545 = vld [vmem:[#allocation2 + $0xc0] sm:$0xff]
  %v546 = vld [vmem:[#allocation2 + $0xc8] sm:$0xff]
  %v547 = vld [vmem:[#allocation2 + $0xd0] sm:$0xff]
  %v548 = vld [vmem:[#allocation2 + $0xd8] sm:$0xff]
  %v549 = vld [vmem:[#allocation2 + $0xe0] sm:$0xff]
  %v550 = vld [vmem:[#allocation2 + $0xe8] sm:$0xff]
  %v552 = vsel %vm215, %v520, 0
  %554 = vmatprep.subr.mxu0 %v522
  %555 = vmatpush1.msra.mxu0 %v521
  %556 = vmatprep.subr.mxu0 %v525
  %557 = vmatpush1.msra.mxu0 %v524
  %558 = vmatprep.subr.mxu0 %v528
  %559 = vmatpush1.msra.mxu0 %v527
  %560 = vmatprep.subr.mxu0 %v531
  %561 = vmatpush1.msra.mxu0 %v530
  %562 = vmatprep.subr.mxu0 %v534
  %563 = vmatpush1.msra.mxu0 %v533
  %564 = vmatprep.subr.mxu0 %v537
  %565 = vmatpush1.msra.mxu0 %v536
  %566 = vmatprep.subr.mxu0 %v540
  %567 = vmatpush1.msra.mxu0 %v539
  %568 = vmatprep.subr.mxu0 %v543
  %569 = vmatpush1.msra.mxu0 %v542
  %570 = vmatprep.subr.mxu0 %v546
  %571 = vmatpush1.msra.mxu0 %v545
  %572 = vmatprep.subr.mxu0 %v549
  %573 = vmatpush1.msra.mxu0 %v548
  %574 = vmatprep.subr.mxu0 0.0
  %575 = vmatpush1.msra.mxu0 0.0
  %576 = vmatprep.subr.mxu0 0.0
  %577 = vmatpush1.msra.mxu0 0.0
  %578 = vmatprep.subr.mxu0 0.0
  %579 = vmatpush1.msra.mxu0 0.0
  %580 = vmatprep.subr.mxu0 0.0
  %581 = vmatpush1.msra.mxu0 0.0
  %582 = vmatprep.subr.mxu0 0.0
  %583 = vmatpush1.msra.mxu0 0.0
  %584 = vmatprep.subr.mxu0 0.0
  %585 = vmatpush1.msra.mxu0 0.0
  %586 = vmatprep.subr.mxu0 0.0
  %587 = vmatpush1.msra.mxu0 0.0
  %588 = vmatprep.subr.mxu0 0.0
  %589 = vmatpush1.msra.mxu0 0.0
  %590 = vmatprep.subr.mxu0 0.0
  %591 = vmatpush1.msra.mxu0 0.0
  %592 = vmatprep.subr.mxu0 0.0
  %593 = vmatpush1.msra.mxu0 0.0
  %594 = vmatprep.subr.mxu0 0.0
  %595 = vmatpush1.msra.mxu0 0.0
  %596 = vmatprep.subr.mxu0 0.0
  %597 = vmatpush1.msra.mxu0 0.0
  %598 = vmatprep.subr.mxu0 0.0
  %599 = vmatpush1.msra.mxu0 0.0
  %600 = vmatprep.subr.mxu0 0.0
  %601 = vmatpush1.msra.mxu0 0.0
  %602 = vmatprep.subr.mxu0 0.0
  %603 = vmatpush1.msra.mxu0 0.0
  %604 = vmatprep.subr.mxu0 0.0
  %605 = vmatpush1.msra.mxu0 0.0
  %606 = vmatprep.subr.mxu0 0.0
  %607 = vmatpush1.msra.mxu0 0.0
  %608 = vmatprep.subr.mxu0 0.0
  %609 = vmatpush1.msra.mxu0 0.0
  %610 = vmatprep.subr.mxu0 0.0
  %611 = vmatpush1.msra.mxu0 0.0
  %612 = vmatprep.subr.mxu0 0.0
  %613 = vmatpush1.msra.mxu0 0.0
  %614 = vmatprep.subr.mxu0 0.0
  %615 = vmatpush1.msra.mxu0 0.0
  %616 = vmatprep.subr.mxu0 0.0
  %617 = vmatpush1.msra.mxu0 0.0
  %618 = vmatprep.mubr.f32.mxu0 0.0
  %619 = vmatmul.mubr.f32.gmra.mrb[0].mxu0 %v552
  %v620 = vpop.f32.mrb[0].mxu0
  %v621 = vadd.f32 0.0, %v620
  %v622 = vpop.f32.mrb[0].mxu0
  %v623 = vadd.f32 0.0, %v622
  %624 = vdwg.mxu0
  %625 = vmatprep.subr.mxu0 0.0
  %626 = vmatpush1.msra.mxu0 %v523
  %627 = vmatprep.subr.mxu0 0.0
  %628 = vmatpush1.msra.mxu0 %v526
  %629 = vmatprep.subr.mxu0 0.0
  %630 = vmatpush1.msra.mxu0 %v529
  %631 = vmatprep.subr.mxu0 0.0
  %632 = vmatpush1.msra.mxu0 %v532
  %633 = vmatprep.subr.mxu0 0.0
  %634 = vmatpush1.msra.mxu0 %v535
  %635 = vmatprep.subr.mxu0 0.0
  %636 = vmatpush1.msra.mxu0 %v538
  %637 = vmatprep.subr.mxu0 0.0
  %638 = vmatpush1.msra.mxu0 %v541
  %639 = vmatprep.subr.mxu0 0.0
  %640 = vmatpush1.msra.mxu0 %v544
  %641 = vmatprep.subr.mxu0 0.0
  %642 = vmatpush1.msra.mxu0 %v547
  %643 = vmatprep.subr.mxu0 0.0
  %644 = vmatpush1.msra.mxu0 %v550
  %645 = vmatprep.subr.mxu0 0.0
  %646 = vmatpush1.msra.mxu0 0.0
  %647 = vmatprep.subr.mxu0 0.0
  %648 = vmatpush1.msra.mxu0 0.0
  %649 = vmatprep.subr.mxu0 0.0
  %650 = vmatpush1.msra.mxu0 0.0
  %651 = vmatprep.subr.mxu0 0.0
  %652 = vmatpush1.msra.mxu0 0.0
  %653 = vmatprep.subr.mxu0 0.0
  %654 = vmatpush1.msra.mxu0 0.0
  %655 = vmatprep.subr.mxu0 0.0
  %656 = vmatpush1.msra.mxu0 0.0
  %657 = vmatprep.subr.mxu0 0.0
  %658 = vmatpush1.msra.mxu0 0.0
  %659 = vmatprep.subr.mxu0 0.0
  %660 = vmatpush1.msra.mxu0 0.0
  %661 = vmatprep.subr.mxu0 0.0
  %662 = vmatpush1.msra.mxu0 0.0
  %663 = vmatprep.subr.mxu0 0.0
  %664 = vmatpush1.msra.mxu0 0.0
  %665 = vmatprep.subr.mxu0 0.0
  %666 = vmatpush1.msra.mxu0 0.0
  %667 = vmatprep.subr.mxu0 0.0
  %668 = vmatpush1.msra.mxu0 0.0
  %669 = vmatprep.subr.mxu0 0.0
  %670 = vmatpush1.msra.mxu0 0.0
  %671 = vmatprep.subr.mxu0 0.0
  %672 = vmatpush1.msra.mxu0 0.0
  %673 = vmatprep.subr.mxu0 0.0
  %674 = vmatpush1.msra.mxu0 0.0
  %675 = vmatprep.subr.mxu0 0.0
  %676 = vmatpush1.msra.mxu0 0.0
  %677 = vmatprep.subr.mxu0 0.0
  %678 = vmatpush1.msra.mxu0 0.0
  %679 = vmatprep.subr.mxu0 0.0
  %680 = vmatpush1.msra.mxu0 0.0
  %681 = vmatprep.subr.mxu0 0.0
  %682 = vmatpush1.msra.mxu0 0.0
  %683 = vmatprep.subr.mxu0 0.0
  %684 = vmatpush1.msra.mxu0 0.0
  %685 = vmatprep.subr.mxu0 0.0
  %686 = vmatpush1.msra.mxu0 0.0
  %687 = vmatprep.subr.mxu0 0.0
  %688 = vmatpush1.msra.mxu0 0.0
  %689 = vmatprep.mubr.f32.mxu0 0.0
  %690 = vmatmul.mubr.f32.gmra.mrb[0].mxu0 %v552
  %v691 = vpop.f32.mrb[0].mxu0
  %v692 = vadd.f32 0.0, %v691
  %v693 = vpop.f32.mrb[0].mxu0
  %694 = vdwg.mxu0
  %s695 = scalar_lea.vmem %s3, 24
  %696 = vst [vmem:[%s695] sm:$0xff] %v621
  %697 = vst [vmem:[%s695 + $0x8] sm:$0xff] %v623
  %698 = vst [vmem:[%s695 + $0x10] sm:$0xff] %v692
  // Predicated region
  $region14: #{_pconv2d_forward.1} parent=0 // pred_check
    _
  $region15: #{_pconv2d_forward.1} parent=0 // pred_check_branch
    %700 = sbr.rel (0) target = $region17
  $region16: #{_pconv2d_forward.1} parent=0 // pred_region
    _
  $region17: #{_pconv2d_forward.1} parent=0 // pred_fallthru
    _
  // Predicated region
  $region18: #{_pconv2d_forward.1} parent=0 // pred_check
    _
  $region19: #{_pconv2d_forward.1} parent=0 // pred_check_branch
    %702 = sbr.rel (0) target = $region21
  $region20: #{_pconv2d_forward.1} parent=0 // pred_region
    _
  $region21: #{_pconv2d_forward.1} parent=0 // pred_fallthru
    _

</llo_original>
